<compile_context>
chip_gen: v6e
topology: v6e:2x2x1
jax: 0.10.0
libtpu: 0.0.40
codegen_flags: <defaults>
</compile_context>

<pallas_src>
import jax
import jax.numpy as jnp
from jax.experimental import pallas as pl
from jax.experimental.pallas import tpu as pltpu

IN_F, HID, OUT_F = 10, 10, 1
SUBLANE = 8
IN_PAD = 16        # 10 input features + 1 bias-ones lane, padded to 16 lanes
HID_PAD = 16       # 10 hidden units  + 1 bias-ones lane, padded to 16 lanes
OUT_PAD = 8        # real output is column 0
TILE_B_MAX = 2048  # large batch-row tile; per-buffer VMEM stays in the KiB range


def _round_up(n, m):
    return ((n + m - 1) // m) * m


def mlp_kernel(x_ref, w1t_ref, w2t_ref, o_ref):
    # x:   (tile_b, 16)  activations; column IN_F is a constant-1 bias lane.
    # w1t: (16, 16)      pre-transposed fc1 weight, b1 folded into row IN_F,
    #                    w1t[IN_F, HID] = 1 so the ones-lane is carried into h.
    # w2t: (16, 8)       pre-transposed fc2 weight, b2 folded into row HID.
    h = jnp.dot(x_ref[...], w1t_ref[...],
                preferred_element_type=jnp.float32)      # cols 0:HID = x@W1.T+b1, col HID = 1
    h = jnp.maximum(h, 0.0)                              # ReLU (1 stays 1, zero-pad stays 0)
    out = jnp.dot(h, w2t_ref[...].astype(jnp.float32),
                  preferred_element_type=jnp.float32)    # col 0 = h@W2.T + b2
    o_ref[...] = out.astype(o_ref.dtype)


def pack_params(w1, b1, w2, b2, dtype=jnp.float32):
    """Pre-transpose, zero-pad to narrow tiles, and fold the biases in (done once).

    `dtype` controls the streamed operand precision (use jnp.bfloat16 on v6e/v7x to
    halve activation/weight HBM bytes); accumulation stays f32 in-kernel.
    """
    w1t = jnp.zeros((IN_PAD, HID_PAD), dtype)
    w1t = w1t.at[:IN_F, :HID].set(w1.T.astype(dtype))
    w1t = w1t.at[IN_F, :HID].set(b1.astype(dtype))
    w1t = w1t.at[IN_F, HID].set(jnp.asarray(1.0, dtype))   # carry ones-lane into h

    # fc2 weight is tiny and fetched once -> keep it f32 for accuracy.
    w2t = jnp.zeros((HID_PAD, OUT_PAD), jnp.float32)
    w2t = w2t.at[:HID, :OUT_F].set(w2.T.astype(jnp.float32))
    w2t = w2t.at[HID, :OUT_F].set(b2.astype(jnp.float32))
    return w1t, w2t


@jax.jit
def simple_nn_forward(x, w1t, w2t):
    """x: (B, 10) -> (B, 1). w1t/w2t come from pack_params (built once, reused)."""
    B = x.shape[0]
    dtype = w1t.dtype

    # Batch tiling: large tiles, but sized so big batches produce >= 2 balanced grid
    # steps (both TensorCores get work on v7x under dimension_semantics=("parallel",)).
    tile_b = min(TILE_B_MAX, _round_up(pl.cdiv(B, 2), SUBLANE))
    b_pad = _round_up(B, tile_b)

    # Narrow (16-lane) activation padding; column IN_F is the constant-1 bias lane.
    x_pad = jnp.zeros((b_pad, IN_PAD), dtype)
    x_pad = x_pad.at[:B, :IN_F].set(x.astype(dtype))
    x_pad = x_pad.at[:, IN_F].set(jnp.asarray(1.0, dtype))

    out_pad = pl.pallas_call(
        mlp_kernel,
        out_shape=jax.ShapeDtypeStruct((b_pad, OUT_PAD), jnp.float32),
        grid=(b_pad // tile_b,),
        in_specs=[
            pl.BlockSpec((tile_b, IN_PAD), lambda i: (i, 0)),    # x: tiled over batch
            pl.BlockSpec((IN_PAD, HID_PAD), lambda i: (0, 0)),   # w1t: VMEM-resident
            pl.BlockSpec((HID_PAD, OUT_PAD), lambda i: (0, 0)),  # w2t: VMEM-resident
        ],
        out_specs=pl.BlockSpec((tile_b, OUT_PAD), lambda i: (i, 0)),
        compiler_params=pltpu.CompilerParams(
            dimension_semantics=("parallel",)),                  # megacore-shard batch (v7x)
    )(x_pad, w1t, w2t)

    # Real result is column 0 of the first B rows (padded rows are garbage, dropped).
    return out_pad[:B, :OUT_F]


def init_params(key):
    # Deterministic init mimicking nn.Linear's uniform(-1/sqrt(fan_in), 1/sqrt(fan_in)).
    k1, k2, k3, k4 = jax.random.split(key, 4)
    bound = 1.0 / jnp.sqrt(10.0)
    w1 = jax.random.uniform(k1, (HID, IN_F), jnp.float32, -bound, bound)   # (out, in)
    b1 = jax.random.uniform(k2, (HID,), jnp.float32, -bound, bound)
    w2 = jax.random.uniform(k3, (OUT_F, HID), jnp.float32, -bound, bound)  # (out, in)
    b2 = jax.random.uniform(k4, (OUT_F,), jnp.float32, -bound, bound)
    return w1, b1, w2, b2


def reference(x, w1, b1, w2, b2):
    return jnp.maximum(x @ w1.T + b1, 0.0) @ w2.T + b2


if __name__ == "__main__":
    key = jax.random.PRNGKey(0)
    kx, kx2, kp = jax.random.split(key, 3)
    w1, b1, w2, b2 = init_params(kp)

    # Pack weights ONCE (hoisted out of the per-call path).
    w1t, w2t = pack_params(w1, b1, w2, b2, jnp.float32)

    # Small batch (single grid step), same regime as the PyTorch spec.
    x = jax.random.normal(kx, (8, IN_F), jnp.float32)
    out = jax.block_until_ready(simple_nn_forward(x, w1t, w2t))
    assert out.shape == (8, OUT_F)
    assert jnp.allclose(out, reference(x, w1, b1, w2, b2), atol=1e-5, rtol=1e-5)

    # Larger batch: 2 balanced grid steps (one per TensorCore on v7x).
    xb = jax.random.normal(kx2, (600, IN_F), jnp.float32)
    outb = jax.block_until_ready(simple_nn_forward(xb, w1t, w2t))
    assert outb.shape == (600, OUT_F)
    assert jnp.allclose(outb, reference(xb, w1, b1, w2, b2), atol=1e-5, rtol=1e-5)

    # bf16 streamed-operand path (recommended on v6e/v7x; f32 MXU accumulation kept).
    w1t_bf, w2t_bf = pack_params(w1, b1, w2, b2, jnp.bfloat16)
    outbf = jax.block_until_ready(simple_nn_forward(xb, w1t_bf, w2t_bf))
    assert outbf.shape == (600, OUT_F)
    assert jnp.allclose(outbf, reference(xb, w1, b1, w2, b2), atol=5e-2, rtol=5e-2)

    print("KERNEL_OK")
</pallas_src>

<mosaic_0001>
module attributes {stable_mosaic.version = 11 : i64} {
  func.func @mlp_kernel(%arg0: i32, %arg1: memref<8x16xf32, #tpu.memory_space<vmem>>, %arg2: memref<16x16xf32, #tpu.memory_space<vmem>>, %arg3: memref<16x8xf32, #tpu.memory_space<vmem>>, %arg4: memref<8x8xf32, #tpu.memory_space<vmem>>) attributes {dimension_semantics = [#tpu.dimension_semantics<parallel>], iteration_bounds = array<i64: 1>, scalar_prefetch = 0 : i64, scratch_operands = 0 : i64, tpu.core_type = #tpu.core_type<tc>, window_params = [{transform_indices = @transform_0, window_bounds = array<i64: 8, 16>}, {pipeline_mode = #tpu.pipeline_mode<synchronous>, transform_indices = @transform_1, window_bounds = array<i64: 16, 16>}, {pipeline_mode = #tpu.pipeline_mode<synchronous>, transform_indices = @transform_2, window_bounds = array<i64: 16, 8>}, {transform_indices = @transform_3, window_bounds = array<i64: 8, 8>}]} {
    %c0 = arith.constant 0 : index
    %c0_0 = arith.constant 0 : index
    %0 = vector.load %arg1[%c0, %c0_0] : memref<8x16xf32, #tpu.memory_space<vmem>>, vector<8x16xf32>
    %c0_1 = arith.constant 0 : index
    %c0_2 = arith.constant 0 : index
    %1 = vector.load %arg2[%c0_1, %c0_2] : memref<16x16xf32, #tpu.memory_space<vmem>>, vector<16x16xf32>
    %cst = arith.constant dense<0.000000e+00> : vector<8x16xf32>
    %2 = tpu.matmul %0, %1, %cst {dimension_numbers = #tpu.dot_dimension_numbers<[1], [0], [0], [1], [0, 0, 1, 1], [], []>} : vector<8x16xf32>, vector<16x16xf32>, vector<8x16xf32> -> vector<8x16xf32>
    %cst_3 = arith.constant 0.000000e+00 : f32
    %3 = vector.broadcast %cst_3 : f32 to vector<8x16xf32>
    %4 = arith.maximumf %2, %3 : vector<8x16xf32>
    %c0_4 = arith.constant 0 : index
    %c0_5 = arith.constant 0 : index
    %5 = vector.load %arg3[%c0_4, %c0_5] : memref<16x8xf32, #tpu.memory_space<vmem>>, vector<16x8xf32>
    %cst_6 = arith.constant dense<0.000000e+00> : vector<8x8xf32>
    %6 = tpu.matmul %4, %5, %cst_6 {dimension_numbers = #tpu.dot_dimension_numbers<[1], [0], [0], [1], [0, 0, 1, 1], [], []>} : vector<8x16xf32>, vector<16x8xf32>, vector<8x8xf32> -> vector<8x8xf32>
    %c0_7 = arith.constant 0 : index
    %c0_8 = arith.constant 0 : index
    %7 = vector.load %arg4[%c0_7, %c0_8] : memref<8x8xf32, #tpu.memory_space<vmem>>, vector<8x8xf32>
    tpu.vector_store %arg4[%c0_7, %c0_8], %6 {strides = array<i32>} : memref<8x8xf32, #tpu.memory_space<vmem>>, vector<8x8xf32>,
    return
  }
  func.func @transform_0(%arg0: i32) -> (i32, i32) {
    %c0_i32 = arith.constant 0 : i32
    %c0_i32_0 = arith.constant 0 : i32
    return %arg0, %c0_i32 : i32, i32
  }
  func.func @transform_1(%arg0: i32) -> (i32, i32) {
    %c0_i32 = arith.constant 0 : i32
    %c0_i32_0 = arith.constant 0 : i32
    %c0_i32_1 = arith.constant 0 : i32
    return %c0_i32, %c0_i32_0 : i32, i32
  }
  func.func @transform_2(%arg0: i32) -> (i32, i32) {
    %c0_i32 = arith.constant 0 : i32
    %c0_i32_0 = arith.constant 0 : i32
    %c0_i32_1 = arith.constant 0 : i32
    return %c0_i32, %c0_i32_0 : i32, i32
  }
  func.func @transform_3(%arg0: i32) -> (i32, i32) {
    %c0_i32 = arith.constant 0 : i32
    %c0_i32_0 = arith.constant 0 : i32
    return %arg0, %c0_i32 : i32, i32
  }
}

</mosaic_0001>

<llo_original>
// kernel: simple_nn_forward.1
$region0: #{simple_nn_forward.1}
  #allocation0 [shape = 'u32[]', space=smem, size = 0x4, offset = 0x4, fixed_abs, tag = 'smem constant byte address 0x4 - core index']
  #allocation1 [shape = 'u32[144,128]{1,0:T(1,128)}', space=vmem, size = 0x12000, scoped, tag = 'internal scratch']
  %s0 = inlined_call_operand.vmem [shape: f32[8,16], index: 0, kind: input, shape index: {}]
  %s1 = inlined_call_operand.vmem [shape: f32[16,16], index: 1, kind: input, shape index: {}]
  %s2 = inlined_call_operand.vmem [shape: f32[16,8], index: 2, kind: input, shape index: {}]
  %s3 = inlined_call_operand.vmem [shape: f32[8,8], index: 3, kind: output, shape index: {}]
  %s4 = sld [smem:[#allocation0]]
  $region22: #{simple_nn_forward.1} parent=0
    _
  %s6 = ssub.s32 1, %s4
  %s7 = scalar_select 0, %s6, %s4
  // Predicated region
  $region2: #{simple_nn_forward.1} parent=0 // pred_check
    _
  $region3: #{simple_nn_forward.1} parent=0 // pred_check_branch
    %9 = sbr.rel (0) target = $region5
  $region4: #{simple_nn_forward.1} parent=0 // pred_region
    _
  $region5: #{simple_nn_forward.1} parent=0 // pred_fallthru
    _
  // Predicated region
  $region6: #{simple_nn_forward.1} parent=0 // pred_check
    _
  $region7: #{simple_nn_forward.1} parent=0 // pred_check_branch
    %11 = sbr.rel (0) target = $region9
  $region8: #{simple_nn_forward.1} parent=0 // pred_region
    _
  $region9: #{simple_nn_forward.1} parent=0 // pred_fallthru
    _
  // Predicated region
  $region10: #{simple_nn_forward.1} parent=0 // pred_check
    _
  $region11: #{simple_nn_forward.1} parent=0 // pred_check_branch
    %13 = sbr.rel (0) target = $region13
  $region12: #{simple_nn_forward.1} parent=0 // pred_region
    _
  $region13: #{simple_nn_forward.1} parent=0 // pred_fallthru
    _
  %v14 = vld [vmem:[%s0] sm:$0xff]
  %v15 = vld [vmem:[%s1] sm:$0xff]
  %v16 = vld [vmem:[%s1 + $0x8] sm:$0xff]
  %vm17 = vcmask 130048
  %v19 = vsel %vm17, %v14, 0
  %21 = vmatprep.subr.mxu0 0.0
  %22 = vmatpush1.msra.mxu0 0.0
  %23 = vmatprep.subr.mxu0 0.0
  %24 = vmatpush1.msra.mxu0 0.0
  %25 = vmatprep.subr.mxu0 0.0
  %26 = vmatpush1.msra.mxu0 0.0
  %27 = vmatprep.subr.mxu0 0.0
  %28 = vmatpush1.msra.mxu0 0.0
  %29 = vmatprep.subr.mxu0 0.0
  %30 = vmatpush1.msra.mxu0 0.0
  %31 = vmatprep.subr.mxu0 0.0
  %32 = vmatpush1.msra.mxu0 0.0
  %33 = vmatprep.subr.mxu0 0.0
  %34 = vmatpush1.msra.mxu0 0.0
  %35 = vmatprep.subr.mxu0 0.0
  %36 = vmatpush1.msra.mxu0 0.0
  %37 = vmatprep.subr.mxu0 0.0
  %38 = vmatpush1.msra.mxu0 0.0
  %39 = vmatprep.subr.mxu0 0.0
  %40 = vmatpush1.msra.mxu0 0.0
  %41 = vmatprep.subr.mxu0 0.0
  %42 = vmatpush1.msra.mxu0 0.0
  %43 = vmatprep.subr.mxu0 0.0
  %44 = vmatpush1.msra.mxu0 0.0
  %45 = vmatprep.subr.mxu0 0.0
  %46 = vmatpush1.msra.mxu0 0.0
  %47 = vmatprep.subr.mxu0 0.0
  %48 = vmatpush1.msra.mxu0 0.0
  %49 = vmatprep.subr.mxu0 0.0
  %50 = vmatpush1.msra.mxu0 %v16
  %51 = vmatprep.subr.mxu0 0.0
  %52 = vmatpush1.msra.mxu0 %v15
  %53 = vmatprep.subr.mxu0 0.0
  %54 = vmatpush2.msra.mxu0 0.0
  %55 = vmatprep.subr.mxu0 0.0
  %56 = vmatpush2.msra.mxu0 0.0
  %57 = vmatprep.subr.mxu0 0.0
  %58 = vmatpush2.msra.mxu0 0.0
  %59 = vmatprep.subr.mxu0 0.0
  %60 = vmatpush2.msra.mxu0 0.0
  %61 = vmatprep.subr.mxu0 0.0
  %62 = vmatpush2.msra.mxu0 0.0
  %63 = vmatprep.subr.mxu0 0.0
  %64 = vmatpush2.msra.mxu0 0.0
  %65 = vmatprep.subr.mxu0 0.0
  %66 = vmatpush2.msra.mxu0 0.0
  %67 = vmatprep.subr.mxu0 0.0
  %68 = vmatpush2.msra.mxu0 0.0
  %69 = vmatprep.subr.mxu0 0.0
  %70 = vmatpush2.msra.mxu0 0.0
  %71 = vmatprep.subr.mxu0 0.0
  %72 = vmatpush2.msra.mxu0 0.0
  %73 = vmatprep.subr.mxu0 0.0
  %74 = vmatpush2.msra.mxu0 0.0
  %75 = vmatprep.subr.mxu0 0.0
  %76 = vmatpush2.msra.mxu0 0.0
  %77 = vmatprep.subr.mxu0 0.0
  %78 = vmatpush2.msra.mxu0 0.0
  %79 = vmatprep.subr.mxu0 0.0
  %80 = vmatpush2.msra.mxu0 0.0
  %81 = vmatprep.subr.mxu0 0.0
  %82 = vmatpush2.msra.mxu0 0.0
  %83 = vmatprep.subr.mxu0 0.0
  %84 = vmatpush2.msra.mxu0 0.0
  %85 = vmatprep.mubr.f32.mxu0 0.0
  %86 = vmatmul.mubr.f32.gmra.mxu0 %v19
  %v87 = vpop.f32.mrf.mxu0
  %v88 = vadd.f32 0.0, %v87
  %v89 = vpop.f32.mrf.mxu0
  %90 = vdwg.mxu0
  %v91 = vmax.f32 %v88, 0.0
  %v92 = vld [vmem:[%s2] sm:$0xff]
  %v93 = vld [vmem:[%s2 + $0x8] sm:$0xff]
  %v95 = vsel %vm17, %v91, 0
  %97 = vmatprep.subr.mxu0 0.0
  %98 = vmatpush1.msra.mxu0 0.0
  %99 = vmatprep.subr.mxu0 0.0
  %100 = vmatpush1.msra.mxu0 0.0
  %101 = vmatprep.subr.mxu0 0.0
  %102 = vmatpush1.msra.mxu0 0.0
  %103 = vmatprep.subr.mxu0 0.0
  %104 = vmatpush1.msra.mxu0 0.0
  %105 = vmatprep.subr.mxu0 0.0
  %106 = vmatpush1.msra.mxu0 0.0
  %107 = vmatprep.subr.mxu0 0.0
  %108 = vmatpush1.msra.mxu0 0.0
  %109 = vmatprep.subr.mxu0 0.0
  %110 = vmatpush1.msra.mxu0 0.0
  %111 = vmatprep.subr.mxu0 0.0
  %112 = vmatpush1.msra.mxu0 0.0
  %113 = vmatprep.subr.mxu0 0.0
  %114 = vmatpush1.msra.mxu0 0.0
  %115 = vmatprep.subr.mxu0 0.0
  %116 = vmatpush1.msra.mxu0 0.0
  %117 = vmatprep.subr.mxu0 0.0
  %118 = vmatpush1.msra.mxu0 0.0
  %119 = vmatprep.subr.mxu0 0.0
  %120 = vmatpush1.msra.mxu0 0.0
  %121 = vmatprep.subr.mxu0 0.0
  %122 = vmatpush1.msra.mxu0 0.0
  %123 = vmatprep.subr.mxu0 0.0
  %124 = vmatpush1.msra.mxu0 0.0
  %125 = vmatprep.subr.mxu0 0.0
  %126 = vmatpush1.msra.mxu0 %v93
  %127 = vmatprep.subr.mxu0 0.0
  %128 = vmatpush1.msra.mxu0 %v92
  %129 = vmatprep.subr.mxu0 0.0
  %130 = vmatpush2.msra.mxu0 0.0
  %131 = vmatprep.subr.mxu0 0.0
  %132 = vmatpush2.msra.mxu0 0.0
  %133 = vmatprep.subr.mxu0 0.0
  %134 = vmatpush2.msra.mxu0 0.0
  %135 = vmatprep.subr.mxu0 0.0
  %136 = vmatpush2.msra.mxu0 0.0
  %137 = vmatprep.subr.mxu0 0.0
  %138 = vmatpush2.msra.mxu0 0.0
  %139 = vmatprep.subr.mxu0 0.0
  %140 = vmatpush2.msra.mxu0 0.0
  %141 = vmatprep.subr.mxu0 0.0
  %142 = vmatpush2.msra.mxu0 0.0
  %143 = vmatprep.subr.mxu0 0.0
  %144 = vmatpush2.msra.mxu0 0.0
  %145 = vmatprep.subr.mxu0 0.0
  %146 = vmatpush2.msra.mxu0 0.0
  %147 = vmatprep.subr.mxu0 0.0
  %148 = vmatpush2.msra.mxu0 0.0
  %149 = vmatprep.subr.mxu0 0.0
  %150 = vmatpush2.msra.mxu0 0.0
  %151 = vmatprep.subr.mxu0 0.0
  %152 = vmatpush2.msra.mxu0 0.0
  %153 = vmatprep.subr.mxu0 0.0
  %154 = vmatpush2.msra.mxu0 0.0
  %155 = vmatprep.subr.mxu0 0.0
  %156 = vmatpush2.msra.mxu0 0.0
  %157 = vmatprep.subr.mxu0 0.0
  %158 = vmatpush2.msra.mxu0 0.0
  %159 = vmatprep.subr.mxu0 0.0
  %160 = vmatpush2.msra.mxu0 0.0
  %161 = vmatprep.mubr.f32.mxu0 0.0
  %162 = vmatmul.mubr.f32.gmra.mxu0 %v95
  %v163 = vpop.f32.mrf.mxu0
  %v164 = vadd.f32 0.0, %v163
  %v165 = vpop.f32.mrf.mxu0
  %166 = vdwg.mxu0
  %vm167 = vcmask 64512
  %168 = vst.msk [vmem:[%s3] sm:$0xff] %vm167, %v164
  // Predicated region
  $region14: #{simple_nn_forward.1} parent=0 // pred_check
    _
  $region15: #{simple_nn_forward.1} parent=0 // pred_check_branch
    %170 = sbr.rel (0) target = $region17
  $region16: #{simple_nn_forward.1} parent=0 // pred_region
    _
  $region17: #{simple_nn_forward.1} parent=0 // pred_fallthru
    _
  // Predicated region
  $region18: #{simple_nn_forward.1} parent=0 // pred_check
    _
  $region19: #{simple_nn_forward.1} parent=0 // pred_check_branch
    %172 = sbr.rel (0) target = $region21
  $region20: #{simple_nn_forward.1} parent=0 // pred_region
    _
  $region21: #{simple_nn_forward.1} parent=0 // pred_fallthru
    _

</llo_original>
